<compile_context>
chip_gen: v7x
topology: tpu7x:2x2x1
jax: 0.10.0
libtpu: 0.0.40
codegen_flags: <defaults>
</compile_context>

<pallas_src>
import math

import jax
import jax.numpy as jnp
from jax.experimental import pallas as pl
from jax.experimental.pallas import tpu as pltpu


def _copy_kernel(x_ref, o_ref):
    # Pure bandwidth: stream one lane-dense tile (HBM in/out via the
    # auto-pipelined BlockSpec DMAs).
    o_ref[...] = x_ref[...]


_LANE_CANDIDATES = (4096, 2048, 1024, 512, 256, 128)
# ~8 MiB per tile -> in+out double-buffered ~= 32 MiB resident.
_TARGET_TILE_BYTES = 8 * 1024 * 1024
# Covers 4x tile with headroom; below v7x's 64 MiB physical VMEM per core and
# well above v5e's 16 MiB scoped default.
_VMEM_LIMIT_BYTES = 48 * 1024 * 1024
# Keep >= 4 grid steps (when the slab allows it) so input DMA of step i+1
# overlaps output writeback of step i.
_MIN_GRID_STEPS = 4


def _pick_2d_layout(total):
    """Pick a lane-dense (rows, cols) factorization with rows % 8 == 0.

    Returns None if no such factorization exists; the caller then falls back
    to a metadata-only jnp.reshape (no kernel), which is both correct and
    faster than any degenerate single-block copy.
    """
    for cols in _LANE_CANDIDATES:
        if total % cols == 0 and (total // cols) % 8 == 0:
            return total // cols, cols
    return None


def _pick_tile_rows(rows, cols, itemsize):
    """Largest row-tile (multiple of 8, divides rows) under the byte cap and
    the minimum-grid-steps cap."""
    # Byte budget cap.
    cap = max(8, (_TARGET_TILE_BYTES // (cols * itemsize)) // 8 * 8)
    # Minimum-grid-steps cap (only binds when the slab is big enough).
    steps_cap = max(8, (rows // _MIN_GRID_STEPS) // 8 * 8)
    cap = min(cap, steps_cap, rows)
    t = max(8, cap // 8 * 8)
    while t > 8:
        if rows % t == 0:
            return t
        t -= 8
    return 8  # rows % 8 == 0 is guaranteed by _pick_2d_layout


def _copy_through_vmem(x2d, donate):
    rows, cols = x2d.shape
    itemsize = jnp.dtype(x2d.dtype).itemsize
    tile_rows = _pick_tile_rows(rows, cols, itemsize)
    grid = (rows // tile_rows,)
    kwargs = {}
    if donate:
        # Only alias when the caller actually donates x; otherwise XLA inserts
        # a defensive full copy of the input (an extra HBM read+write).
        kwargs["input_output_aliases"] = {0: 0}
    return pl.pallas_call(
        _copy_kernel,
        out_shape=jax.ShapeDtypeStruct((rows, cols), x2d.dtype),
        grid=grid,
        in_specs=[pl.BlockSpec((tile_rows, cols), lambda i: (i, 0))],
        out_specs=pl.BlockSpec((tile_rows, cols), lambda i: (i, 0)),
        compiler_params=pltpu.CompilerParams(
            # Mem-bound copy; independent row tiles.
            dimension_semantics=(pltpu.PARALLEL,),
            vmem_limit_bytes=_VMEM_LIMIT_BYTES,
        ),
        cost_estimate=pl.CostEstimate(
            flops=0,
            transcendentals=0,
            bytes_accessed=2 * rows * cols * itemsize,
        ),
        **kwargs,
    )(x2d)


def reshape_pallas(x, dims, *, donate=False, force_copy=True):
    """Equivalent of torch: x.view(x.size(0), *dims).

    force_copy=True runs the Pallas streaming-copy kernel (the exercise);
    force_copy=False returns the metadata-only jnp.reshape (production path).
    """
    b = x.shape[0]
    flat = math.prod(x.shape[1:])
    dims = tuple(dims)
    if -1 in dims:
        known = math.prod(d for d in dims if d != -1)
        dims = tuple(flat // known if d == -1 else d for d in dims)
    tgt = math.prod(dims)
    assert tgt == flat, f"cannot view {x.shape} as ({b}, {dims})"
    out_shape = (b,) + dims

    if not force_copy:
        return x.reshape(out_shape)  # metadata-only: zero HBM traffic

    total = b * flat
    layout = _pick_2d_layout(total)
    if layout is None:
        # No lane-dense factorization: a copy kernel here would need masked
        # stores / a single giant VMEM block, so take the metadata-only path.
        return x.reshape(out_shape)

    rows, cols = layout
    # Row-major flatten -> (rows, cols) preserves element order exactly, so
    # the final reshape back to (b, *dims) matches torch .view semantics.
    x2d = x.reshape(rows, cols)
    out2d = _copy_through_vmem(x2d, donate)
    return out2d.reshape(out_shape)


if __name__ == "__main__":
    key = jax.random.PRNGKey(0)
    # Input like a small NCHW activation: (batch=2, C=4, H=16, W=16).
    x = jax.random.normal(key, (2, 4, 16, 16), dtype=jnp.float32)

    # Reshape(8, 128): view (2, 4, 16, 16) -> (2, 8, 128)
    dims = (8, 128)
    out = reshape_pallas(x, dims)
    out = jax.block_until_ready(out)

    # Correctness check against plain reshape semantics (== torch .view).
    ref = x.reshape(x.shape[0], *dims)
    assert out.shape == (2, 8, 128)
    assert out.dtype == x.dtype
    assert jnp.array_equal(out, ref)

    print("KERNEL_OK")
</pallas_src>

<mosaic_0001>
module attributes {stable_mosaic.version = 11 : i64} {
  func.func @_copy_kernel(%arg0: i32, %arg1: memref<8x256xf32, #tpu.memory_space<vmem>>, %arg2: memref<8x256xf32, #tpu.memory_space<vmem>>) attributes {dimension_semantics = [#tpu.dimension_semantics<parallel>], iteration_bounds = array<i64: 1>, scalar_prefetch = 0 : i64, scratch_operands = 0 : i64, tpu.core_type = #tpu.core_type<tc>, window_params = [{transform_indices = @transform_0, window_bounds = array<i64: 8, 256>}, {transform_indices = @transform_1, window_bounds = array<i64: 8, 256>}]} {
    %c0 = arith.constant 0 : index
    %c0_0 = arith.constant 0 : index
    %0 = vector.load %arg1[%c0, %c0_0] : memref<8x256xf32, #tpu.memory_space<vmem>>, vector<8x256xf32>
    %c0_1 = arith.constant 0 : index
    %c0_2 = arith.constant 0 : index
    %1 = vector.load %arg2[%c0_1, %c0_2] : memref<8x256xf32, #tpu.memory_space<vmem>>, vector<8x256xf32>
    tpu.vector_store %arg2[%c0_1, %c0_2], %0 {strides = array<i32>} : memref<8x256xf32, #tpu.memory_space<vmem>>, vector<8x256xf32>,
    return
  }
  func.func @transform_0(%arg0: i32) -> (i32, i32) {
    %c0_i32 = arith.constant 0 : i32
    %c0_i32_0 = arith.constant 0 : i32
    return %arg0, %c0_i32 : i32, i32
  }
  func.func @transform_1(%arg0: i32) -> (i32, i32) {
    %c0_i32 = arith.constant 0 : i32
    %c0_i32_0 = arith.constant 0 : i32
    return %arg0, %c0_i32 : i32, i32
  }
}

</mosaic_0001>

<llo_original>
// kernel: tpu_custom_call.1
$region0: #{tpu_custom_call.1}
  #allocation0 [shape = 'u32[]', space=smem, size = 0x4, offset = 0x4, fixed_abs, tag = 'smem constant byte address 0x4 - core index']
  #allocation1 [shape = 'u32[144,128]{1,0:T(1,128)}', space=vmem, size = 0x12000, scoped, tag = 'internal scratch']
  %s0 = inlined_call_operand.hbm [shape: f32[8,256], index: 0, kind: input, shape index: {}]
  %s1 = inlined_call_operand.hbm [shape: f32[8,256], index: 1, kind: output, shape index: {}]
  %s2 = sld [smem:[#allocation0]]
  $region18: #{tpu_custom_call.1} parent=0
    _
  %s4 = ssub.s32 1, %s2
  %s5 = scalar_select 0, %s4, %s2
  $region1: #{tpu_custom_call.1} parent=0
    #allocation2 [shape = 'u8[8192]{0}', space=vmem, size = 0x2000, scoped, tag = 'input window, operand 0, single buffered']
    #allocation3 [shape = 's32[1]{0}', space=sflag, size = 0x4, scoped, tag = 'scoped memory for tpu_custom_call.1']
    #allocation4 [shape = 's32[1]{0}', space=sflag, size = 0x4, scoped, tag = 'scoped memory for tpu_custom_call.1']
    #allocation5 [shape = 'u8[8192]{0}', space=vmem, size = 0x2000, scoped, tag = 'output window, operand 0, single buffered']
    %6 = vsyncpa [#allocation3], 0
    %7 = vsyncpa [#allocation4], 0
    // Predicated region
    $region2: #{tpu_custom_call.1} parent=1 // pred_check
      _
    $region3: #{tpu_custom_call.1} parent=1 // pred_check_branch
      %9 = sbr.rel (0) target = $region5
    $region4: #{tpu_custom_call.1} parent=1 // pred_region
      %s11 = ssub.s32 256, 256
      %12 = vsyncadd [#allocation3], %s11
      %s14 = sshll.u32 [#allocation2], 4
      %s15 = int_to_ptr.vmem [resolvable:$true] %s14
      %17 = dma.hbm_to_vmem [thread:$0]  %s0, 256, %s15, [#allocation3]
    $region5: #{tpu_custom_call.1} parent=1 // pred_fallthru
      _
    // Predicated region
    $region6: #{tpu_custom_call.1} parent=1 // pred_check
      _
    $region7: #{tpu_custom_call.1} parent=1 // pred_check_branch
      %19 = sbr.rel (0) target = $region9
    $region8: #{tpu_custom_call.1} parent=1 // pred_region
      %20 = dma.done [#allocation3], 256
    $region9: #{tpu_custom_call.1} parent=1 // pred_fallthru
      _
    %v21 = vld [vmem:[#allocation2] sm:$0xff]
    %v22 = vld [vmem:[#allocation2 + $0x8] sm:$0xff]
    %23 = vst [vmem:[#allocation5] sm:$0xff] %v21
    %24 = vst [vmem:[#allocation5 + $0x8] sm:$0xff] %v22
    // Predicated region
    $region10: #{tpu_custom_call.1} parent=1 // pred_check
      _
    $region11: #{tpu_custom_call.1} parent=1 // pred_check_branch
      %26 = sbr.rel (0) target = $region13
    $region12: #{tpu_custom_call.1} parent=1 // pred_region
      %s28 = ssub.s32 256, 256
      %29 = vsyncadd [#allocation4], %s28
      %s31 = sshll.u32 [#allocation5], 4
      %s32 = int_to_ptr.vmem [resolvable:$true] %s31
      %34 = dma.vmem_to_hbm [thread:$0]  %s32, 256, %s1, [#allocation4]
    $region13: #{tpu_custom_call.1} parent=1 // pred_fallthru
      _
    // Predicated region
    $region14: #{tpu_custom_call.1} parent=1 // pred_check
      _
    $region15: #{tpu_custom_call.1} parent=1 // pred_check_branch
      %36 = sbr.rel (0) target = $region17
    $region16: #{tpu_custom_call.1} parent=1 // pred_region
      %37 = dma.done [#allocation4], 256
    $region17: #{tpu_custom_call.1} parent=1 // pred_fallthru
      _
    %38 = vsyncpa [#allocation3], 1
    %39 = vsyncpa [#allocation4], 1

</llo_original>
